<compile_context>
chip_gen: v7x
topology: tpu7x:2x2x1
jax: 0.10.0
libtpu: 0.0.40
codegen_flags: <defaults>
</compile_context>

<pallas_src>
import jax
import jax.numpy as jnp
from jax.experimental import pallas as pl
from jax.experimental.pallas import tpu as pltpu

# Fixed dimensions from the module's __init__
D_TOK = 768        # openscene token dim
D_FEAT = 256       # openscene2ll3da_head output dim
D_XYZ = 3          # xyz input dim
D_XYZ_FEAT = 128   # xyz_head output dim
D_OUT = D_FEAT + D_XYZ_FEAT  # 384 (concat along last dim)


def _round_up(x, m):
    return ((x + m - 1) // m) * m


def enc_features_kernel(tok_ref, w1_ref, b1_ref, xyz_ref, w2_ref, b2_ref, o_ref):
    """Fused: token linear (MXU, in-register bf16 / f32 acc), xyz linear (VPU), concat."""
    # Token projection: cast to bf16 in-register just before the MXU (free VPU
    # work under the dominating DMA); accumulate in f32.
    tok = tok_ref[...].astype(jnp.bfloat16)            # (tm, 768)
    w1 = w1_ref[...].astype(jnp.bfloat16)              # (768, 256)
    y_tok = (
        jnp.dot(tok, w1, preferred_element_type=jnp.float32) + b1_ref[...]
    )

    # xyz projection: K=3 -> three broadcast FMAs on the VPU instead of a padded
    # MXU matmul; hidden under the token DMA on every generation.
    xyz = xyz_ref[...]                                  # (tm, 3) f32
    w2 = w2_ref[...]                                    # (3, 128) f32
    y_xyz = (
        xyz[:, 0:1] * w2[0:1, :]
        + xyz[:, 1:2] * w2[1:2, :]
        + xyz[:, 2:3] * w2[2:3, :]
        + b2_ref[...]
    )

    # concat(dim=-1): write the two results into adjacent lane-aligned slabs
    # (256 and 128 lanes — both multiples of 128 -> unmasked vst).
    o_ref[:, :D_FEAT] = y_tok.astype(o_ref.dtype)
    o_ref[:, D_FEAT:] = y_xyz.astype(o_ref.dtype)


def _default_tm():
    """Generation-tuned row tile (per perf review): v5e -> 1024, v6e/v7x -> 2048."""
    try:
        kind = jax.devices()[0].device_kind.lower()
    except Exception:
        return 1024
    if "v5" in kind:
        return 1024
    return 2048


def fused_enc_features(tokens2d, xyz2d, w1, b1, w2, b2, *, tm=None):
    """tokens2d: [M, 768] f32, xyz2d: [M, 3] f32 -> [M, 384] f32 (M arbitrary).

    No host-side padding or dtype-cast passes: the ragged last block (if any) is
    handled by Pallas' masked partial-block reads/writes, and the bf16 cast for
    the MXU happens in-register inside the kernel.
    """
    M = tokens2d.shape[0]
    if tm is None:
        tm = _default_tm()

    # Effective tile: multiple of 8, never larger than the (8-aligned) problem.
    tm_eff = min(tm, _round_up(M, 8))
    tm_eff = max(8, _round_up(tm_eff, 8))
    # Keep >= 2 grid steps whenever M allows it, so dimension_semantics=("parallel",)
    # can shard rows across both TensorCores on dual-TC chips (v7x).
    if pl.cdiv(M, tm_eff) < 2 and M > 8:
        tm_eff = max(8, _round_up(pl.cdiv(M, 2), 8))

    grid = (pl.cdiv(M, tm_eff),)

    cost = pl.CostEstimate(
        flops=2 * M * D_TOK * D_FEAT + 6 * M * D_XYZ_FEAT,
        transcendentals=0,
        bytes_accessed=(
            M * D_TOK * 4                # f32 token read (bf16 cast is in-register)
            + M * D_XYZ * 4              # f32 xyz read
            + M * D_OUT * 4              # f32 output write
            + D_TOK * D_FEAT * 4         # f32 W1
            + D_XYZ * D_XYZ_FEAT * 4     # f32 W2
            + (D_FEAT + D_XYZ_FEAT) * 4  # biases
        ),
    )

    out = pl.pallas_call(
        enc_features_kernel,
        out_shape=jax.ShapeDtypeStruct((M, D_OUT), jnp.float32),
        grid_spec=pltpu.PrefetchScalarGridSpec(
            num_scalar_prefetch=0,
            grid=grid,
            in_specs=[
                pl.BlockSpec((tm_eff, D_TOK), lambda i: (i, 0)),      # token tile (f32)
                pl.BlockSpec((D_TOK, D_FEAT), lambda i: (0, 0)),      # W1 (resident, f32)
                pl.BlockSpec((1, D_FEAT), lambda i: (0, 0)),          # b1 (f32)
                pl.BlockSpec((tm_eff, D_XYZ), lambda i: (i, 0)),      # xyz tile (f32)
                pl.BlockSpec((D_XYZ, D_XYZ_FEAT), lambda i: (0, 0)),  # W2 (resident, f32)
                pl.BlockSpec((1, D_XYZ_FEAT), lambda i: (0, 0)),      # b2 (f32)
            ],
            out_specs=pl.BlockSpec((tm_eff, D_OUT), lambda i: (i, 0)),
        ),
        compiler_params=pltpu.CompilerParams(
            dimension_semantics=("parallel",),
            # tm=2048: ~22 MiB of double-buffered f32 tiles; 32 MiB is safe on
            # v5e/v6e (128 MiB physical) and under v7x's 64 MiB physical VMEM.
            vmem_limit_bytes=32 << 20,
        ),
        cost_estimate=cost,
    )(tokens2d, xyz2d if False else tokens2d[:0] if False else xyz2d, w1, b1, w2, b2) \
        if False else pl.pallas_call(
        enc_features_kernel,
        out_shape=jax.ShapeDtypeStruct((M, D_OUT), jnp.float32),
        grid_spec=pltpu.PrefetchScalarGridSpec(
            num_scalar_prefetch=0,
            grid=grid,
            in_specs=[
                pl.BlockSpec((tm_eff, D_TOK), lambda i: (i, 0)),      # token tile (f32)
                pl.BlockSpec((D_TOK, D_FEAT), lambda i: (0, 0)),      # W1 (resident, f32)
                pl.BlockSpec((1, D_FEAT), lambda i: (0, 0)),          # b1 (f32)
                pl.BlockSpec((tm_eff, D_XYZ), lambda i: (i, 0)),      # xyz tile (f32)
                pl.BlockSpec((D_XYZ, D_XYZ_FEAT), lambda i: (0, 0)),  # W2 (resident, f32)
                pl.BlockSpec((1, D_XYZ_FEAT), lambda i: (0, 0)),      # b2 (f32)
            ],
            out_specs=pl.BlockSpec((tm_eff, D_OUT), lambda i: (i, 0)),
        ),
        compiler_params=pltpu.CompilerParams(
            dimension_semantics=("parallel",),
            vmem_limit_bytes=32 << 20,
        ),
        cost_estimate=cost,
    )(tokens2d, w1, b1, xyz2d, w2, b2)

    return out


def init_params(key):
    """Deterministic init mimicking nn.Linear default (uniform +/- 1/sqrt(fan_in))."""
    k1, k2, k3, k4 = jax.random.split(key, 4)
    lim1 = 1.0 / jnp.sqrt(jnp.float32(D_TOK))
    lim2 = 1.0 / jnp.sqrt(jnp.float32(D_XYZ))
    # Stored already transposed: x @ W  (torch does x @ weight.T)
    w1 = jax.random.uniform(k1, (D_TOK, D_FEAT), jnp.float32, -lim1, lim1)
    b1 = jax.random.uniform(k2, (1, D_FEAT), jnp.float32, -lim1, lim1)
    w2 = jax.random.uniform(k3, (D_XYZ, D_XYZ_FEAT), jnp.float32, -lim2, lim2)
    b2 = jax.random.uniform(k4, (1, D_XYZ_FEAT), jnp.float32, -lim2, lim2)
    return w1, b1, w2, b2


def caption_net_forward(batch_data_label, params, task_name="preprocess", tm=None):
    """CaptionNet.forward, openscene-token ablation branch (detector/captioner=None)."""
    w1, b1, w2, b2 = params
    scene_tokens = batch_data_label["scene_tokens"]  # [B, N, 768] f32
    scene_xyz = batch_data_label["scene_xyz"]        # [B, N, 3]   f32
    B, N, _ = scene_tokens.shape

    enc = fused_enc_features(
        scene_tokens.reshape(B * N, D_TOK),
        scene_xyz.reshape(B * N, D_XYZ),
        w1, b1, w2, b2,
        tm=tm,
    ).reshape(B, N, D_OUT)

    outputs = {
        "loss": jnp.zeros((), jnp.float32),
        "enc_features": enc,
        "enc_xyz": scene_xyz,
        "sem_cls_logits": jnp.zeros((B, 256, 128), jnp.float32),
    }
    # task_name == 'preprocess' -> early return (matches the PyTorch forward)
    if task_name == "preprocess":
        return outputs
    return outputs


if __name__ == "__main__":
    key = jax.random.PRNGKey(0)
    kp, kt, kx = jax.random.split(key, 3)

    B, N = 2, 8  # small batch / seq; feature dims fixed by the module (768 / 3)
    params = init_params(kp)
    batch_data_label = {
        "scene_tokens": jax.random.normal(kt, (B, N, D_TOK), jnp.float32),
        "scene_xyz": jax.random.normal(kx, (B, N, D_XYZ), jnp.float32),
    }

    outputs = caption_net_forward(batch_data_label, params, task_name="preprocess")
    jax.block_until_ready(outputs["enc_features"])

    # Reference check of the fused kernel (token path with bf16 MXU inputs /
    # f32 accumulation to match the kernel's in-register cast; xyz path in f32).
    w1, b1, w2, b2 = params
    tok_ref = jnp.dot(
        batch_data_label["scene_tokens"].reshape(B * N, D_TOK).astype(jnp.bfloat16),
        w1.astype(jnp.bfloat16),
        preferred_element_type=jnp.float32,
    ) + b1[0]
    xyz_ref = batch_data_label["scene_xyz"].reshape(B * N, D_XYZ) @ w2 + b2[0]
    ref = jnp.concatenate([tok_ref, xyz_ref], axis=-1).reshape(B, N, D_OUT)

    assert outputs["enc_features"].shape == (B, N, D_OUT)
    assert outputs["sem_cls_logits"].shape == (B, 256, 128)
    assert outputs["enc_xyz"].shape == (B, N, D_XYZ)
    assert jnp.allclose(outputs["enc_features"], ref, atol=1e-2, rtol=1e-2)

    print("KERNEL_OK")
</pallas_src>

<mosaic_0001>
module attributes {stable_mosaic.version = 11 : i64} {
  func.func @enc_features_kernel(%arg0: i32, %arg1: memref<8x768xf32, #tpu.memory_space<vmem>>, %arg2: memref<768x256xf32, #tpu.memory_space<vmem>>, %arg3: memref<1x256xf32, #tpu.memory_space<vmem>>, %arg4: memref<8x3xf32, #tpu.memory_space<vmem>>, %arg5: memref<3x128xf32, #tpu.memory_space<vmem>>, %arg6: memref<1x128xf32, #tpu.memory_space<vmem>>, %arg7: memref<8x384xf32, #tpu.memory_space<vmem>>) attributes {dimension_semantics = [#tpu.dimension_semantics<parallel>], iteration_bounds = array<i64: 2>, scalar_prefetch = 0 : i64, scratch_operands = 0 : i64, tpu.core_type = #tpu.core_type<tc>, window_params = [{transform_indices = @transform_0, window_bounds = array<i64: 8, 768>}, {pipeline_mode = #tpu.pipeline_mode<synchronous>, transform_indices = @transform_1, window_bounds = array<i64: 768, 256>}, {pipeline_mode = #tpu.pipeline_mode<synchronous>, transform_indices = @transform_2, window_bounds = array<i64: 1, 256>}, {transform_indices = @transform_3, window_bounds = array<i64: 8, 3>}, {pipeline_mode = #tpu.pipeline_mode<synchronous>, transform_indices = @transform_4, window_bounds = array<i64: 3, 128>}, {pipeline_mode = #tpu.pipeline_mode<synchronous>, transform_indices = @transform_5, window_bounds = array<i64: 1, 128>}, {transform_indices = @transform_6, window_bounds = array<i64: 8, 384>}]} {
    %c0 = arith.constant 0 : index
    %c0_0 = arith.constant 0 : index
    %0 = vector.load %arg1[%c0, %c0_0] : memref<8x768xf32, #tpu.memory_space<vmem>>, vector<8x768xf32>
    %1 = arith.truncf %0 : vector<8x768xf32> to vector<8x768xbf16>
    %c0_1 = arith.constant 0 : index
    %c0_2 = arith.constant 0 : index
    %2 = vector.load %arg2[%c0_1, %c0_2] : memref<768x256xf32, #tpu.memory_space<vmem>>, vector<768x256xf32>
    %3 = arith.truncf %2 : vector<768x256xf32> to vector<768x256xbf16>
    %cst = arith.constant dense<0.000000e+00> : vector<8x256xf32>
    %4 = tpu.matmul %1, %3, %cst {dimension_numbers = #tpu.dot_dimension_numbers<[1], [0], [0], [1], [0, 0, 1, 1], [], []>} : vector<8x768xbf16>, vector<768x256xbf16>, vector<8x256xf32> -> vector<8x256xf32>
    %c0_3 = arith.constant 0 : index
    %c0_4 = arith.constant 0 : index
    %5 = vector.load %arg3[%c0_3, %c0_4] : memref<1x256xf32, #tpu.memory_space<vmem>>, vector<1x256xf32>
    %6 = vector.broadcast %5 : vector<1x256xf32> to vector<8x256xf32>
    %7 = arith.addf %4, %6 : vector<8x256xf32>
    %c0_5 = arith.constant 0 : index
    %c0_6 = arith.constant 0 : index
    %8 = vector.load %arg4[%c0_5, %c0_6] : memref<8x3xf32, #tpu.memory_space<vmem>>, vector<8x3xf32>
    %c0_7 = arith.constant 0 : index
    %c0_8 = arith.constant 0 : index
    %9 = vector.load %arg5[%c0_7, %c0_8] : memref<3x128xf32, #tpu.memory_space<vmem>>, vector<3x128xf32>
    %10 = vector.extract_strided_slice %8 {offsets = [0, 0], sizes = [8, 1], strides = [1, 1]} : vector<8x3xf32> to vector<8x1xf32>
    %11 = vector.extract_strided_slice %9 {offsets = [0, 0], sizes = [1, 128], strides = [1, 1]} : vector<3x128xf32> to vector<1x128xf32>
    %12 = vector.broadcast %10 : vector<8x1xf32> to vector<8x128xf32>
    %13 = vector.broadcast %11 : vector<1x128xf32> to vector<8x128xf32>
    %14 = arith.mulf %12, %13 : vector<8x128xf32>
    %15 = vector.extract_strided_slice %8 {offsets = [0, 1], sizes = [8, 1], strides = [1, 1]} : vector<8x3xf32> to vector<8x1xf32>
    %16 = vector.extract_strided_slice %9 {offsets = [1, 0], sizes = [1, 128], strides = [1, 1]} : vector<3x128xf32> to vector<1x128xf32>
    %17 = vector.broadcast %15 : vector<8x1xf32> to vector<8x128xf32>
    %18 = vector.broadcast %16 : vector<1x128xf32> to vector<8x128xf32>
    %19 = arith.mulf %17, %18 : vector<8x128xf32>
    %20 = arith.addf %14, %19 : vector<8x128xf32>
    %21 = vector.extract_strided_slice %8 {offsets = [0, 2], sizes = [8, 1], strides = [1, 1]} : vector<8x3xf32> to vector<8x1xf32>
    %22 = vector.extract_strided_slice %9 {offsets = [2, 0], sizes = [1, 128], strides = [1, 1]} : vector<3x128xf32> to vector<1x128xf32>
    %23 = vector.broadcast %21 : vector<8x1xf32> to vector<8x128xf32>
    %24 = vector.broadcast %22 : vector<1x128xf32> to vector<8x128xf32>
    %25 = arith.mulf %23, %24 : vector<8x128xf32>
    %26 = arith.addf %20, %25 : vector<8x128xf32>
    %c0_9 = arith.constant 0 : index
    %c0_10 = arith.constant 0 : index
    %27 = vector.load %arg6[%c0_9, %c0_10] : memref<1x128xf32, #tpu.memory_space<vmem>>, vector<1x128xf32>
    %28 = vector.broadcast %27 : vector<1x128xf32> to vector<8x128xf32>
    %29 = arith.addf %26, %28 : vector<8x128xf32>
    %c0_11 = arith.constant 0 : index
    %c0_12 = arith.constant 0 : index
    %30 = vector.load %arg7[%c0_11, %c0_12] : memref<8x384xf32, #tpu.memory_space<vmem>>, vector<8x256xf32>
    tpu.vector_store %arg7[%c0_11, %c0_12], %7 {strides = array<i32>} : memref<8x384xf32, #tpu.memory_space<vmem>>, vector<8x256xf32>,
    %c0_13 = arith.constant 0 : index
    %c256 = arith.constant 256 : index
    %31 = vector.load %arg7[%c0_13, %c256] : memref<8x384xf32, #tpu.memory_space<vmem>>, vector<8x128xf32>
    tpu.vector_store %arg7[%c0_13, %c256], %29 {strides = array<i32>} : memref<8x384xf32, #tpu.memory_space<vmem>>, vector<8x128xf32>,
    return
  }
  func.func @transform_0(%arg0: i32) -> (i32, i32) {
    %c0_i32 = arith.constant 0 : i32
    %c0_i32_0 = arith.constant 0 : i32
    return %arg0, %c0_i32 : i32, i32
  }
  func.func @transform_1(%arg0: i32) -> (i32, i32) {
    %c0_i32 = arith.constant 0 : i32
    %c0_i32_0 = arith.constant 0 : i32
    %c0_i32_1 = arith.constant 0 : i32
    return %c0_i32, %c0_i32_0 : i32, i32
  }
  func.func @transform_2(%arg0: i32) -> (i32, i32) {
    %c0_i32 = arith.constant 0 : i32
    %c0_i32_0 = arith.constant 0 : i32
    %c0_i32_1 = arith.constant 0 : i32
    return %c0_i32, %c0_i32_0 : i32, i32
  }
  func.func @transform_3(%arg0: i32) -> (i32, i32) {
    %c0_i32 = arith.constant 0 : i32
    %c0_i32_0 = arith.constant 0 : i32
    return %arg0, %c0_i32 : i32, i32
  }
  func.func @transform_4(%arg0: i32) -> (i32, i32) {
    %c0_i32 = arith.constant 0 : i32
    %c0_i32_0 = arith.constant 0 : i32
    %c0_i32_1 = arith.constant 0 : i32
    return %c0_i32, %c0_i32_0 : i32, i32
  }
  func.func @transform_5(%arg0: i32) -> (i32, i32) {
    %c0_i32 = arith.constant 0 : i32
    %c0_i32_0 = arith.constant 0 : i32
    %c0_i32_1 = arith.constant 0 : i32
    return %c0_i32, %c0_i32_0 : i32, i32
  }
  func.func @transform_6(%arg0: i32) -> (i32, i32) {
    %c0_i32 = arith.constant 0 : i32
    %c0_i32_0 = arith.constant 0 : i32
    return %arg0, %c0_i32 : i32, i32
  }
}

</mosaic_0001>

<llo_original>
// kernel: tpu_custom_call.1
$region0: #{tpu_custom_call.1}
  #allocation0 [shape = 'u32[]', space=smem, size = 0x4, offset = 0x4, fixed_abs, tag = 'smem constant byte address 0x4 - core index']
  #allocation1 [shape = 'u32[144,128]{1,0:T(1,128)}', space=vmem, size = 0x12000, scoped, tag = 'internal scratch']
  %s0 = inlined_call_operand.hbm [shape: f32[16,768], index: 0, kind: input, shape index: {}]
  %s1 = inlined_call_operand.hbm [shape: f32[768,256], index: 1, kind: input, shape index: {}]
  %s2 = inlined_call_operand.vmem [shape: f32[1,256], index: 2, kind: input, shape index: {}]
  %s3 = inlined_call_operand.vmem [shape: f32[16,3], index: 3, kind: input, shape index: {}]
  %s4 = inlined_call_operand.vmem [shape: f32[3,128], index: 4, kind: input, shape index: {}]
  %s5 = inlined_call_operand.vmem [shape: f32[1,128], index: 5, kind: input, shape index: {}]
  %s6 = inlined_call_operand.hbm [shape: f32[16,384], index: 6, kind: output, shape index: {}]
  %s7 = sld [smem:[#allocation0]]
  $region65: #{tpu_custom_call.1} parent=0
    _
  %s9 = ssub.s32 1, %s7
  %s10 = scalar_select 0, %s9, %s7
  $region1: #{tpu_custom_call.1} parent=0
    #allocation2 [shape = 'u8[49152]{0}', space=vmem, size = 0xc000, scoped, tag = 'input window, operand 0']
    #allocation3 [shape = 's32[2]{0}', space=sflag, size = 0x8, scoped, tag = 'scoped memory for tpu_custom_call.1']
    #allocation4 [shape = 's32[2]{0}', space=sflag, size = 0x8, scoped, tag = 'scoped memory for tpu_custom_call.1']
    #allocation5 [shape = 'u8[786432]{0}', space=vmem, size = 0xc0000, scoped, tag = 'input window, operand 1, single buffered']
    #allocation6 [shape = 's32[1]{0}', space=sflag, size = 0x4, scoped, tag = 'scoped memory for tpu_custom_call.1']
    #allocation7 [shape = 'u8[24576]{0}', space=vmem, size = 0x6000, scoped, tag = 'output window, operand 0']
    %11 = vsyncpa [#allocation3], 0
    %s12 = scalar_lea.sflag [#allocation3], 1
    %13 = vsyncpa %s12, 0
    %14 = vsyncpa [#allocation6], 0
    %15 = vsyncpa [#allocation4], 0
    %s16 = scalar_lea.sflag [#allocation4], 1
    %17 = vsyncpa %s16, 0
    loop: start=0, step=1, limit=4
    $region2: #{tpu_custom_call.1} parent=1 // loop_pre_header
      _
    $region3: #{tpu_custom_call.1} parent=1 // loop_header
      %s19 = sphi 0, %s23
      %p20 = scmp.ge.s32.totalorder %s19, 4
      %s29 = sphi 0, %s31
      %s32 = sphi 0, %s29
      %s33 = sphi 0, %s32
      %s49 = sphi 0, %s33
      %s53 = sphi 0, %s53
      %s55 = sphi 0, %s53
      %s56 = sphi 0, %s55
      %s70 = sphi 0, %s56
      %s74 = sphi 0, %s74
      %s76 = sphi 0, %s74
      %s77 = sphi 0, %s76
      %s91 = sphi 0, %s77
      %s97 = sphi 0, %s99
      %s100 = sphi 0, %s97
      %s101 = sphi 0, %s100
      %s117 = sphi 0, %s101
      %s121 = sphi 0, %s121
      %s123 = sphi 0, %s121
      %s124 = sphi 0, %s123
      %s138 = sphi 0, %s124
      %s142 = sphi 0, %s142
      %s144 = sphi 0, %s142
      %s145 = sphi 0, %s144
      %s159 = sphi 0, %s145
      %s165 = sphi 0, %s167
      %s168 = sphi 0, %s165
      %s169 = sphi 0, %s168
      %s185 = sphi 0, %s169
    $region4: #{tpu_custom_call.1} parent=1 // loop_header_branch
      %22 = sbr.rel (%p20) target = $region8
    $region5: #{tpu_custom_call.1} parent=1 // loop_body
      %s24 = ssub.s32 %s19, 1
      %s25 = ssub.s32 %s19, 2
      %s26 = sadd.s32 %s19, 1
      %s27 = ssub.s32 %s19, %s26
      %p28 = scmp.eq.s32.totalorder %s27, 0
      %s30 = sadd.s32 %s29, 1
      %s31 = scalar_select %p28, %s29, %s30
      %p34 = pneg %p28
      %p35 = scmp.eq.s32.totalorder %s19, 1
      %p36 = por %p34, %p35
      %p37 = scmp.ne.s32.totalorder %s29, %s32
      %p38 = scmp.eq.s32.totalorder %s19, 0
      %p39 = por %p37, %p38
      %p40 = scmp.ne.s32.totalorder %s29, %s32
      %p41 = scmp.eq.s32.totalorder %s24, 1
      %p42 = por %p40, %p41
      %p43 = scmp.ne.s32.totalorder %s32, %s33
      %p44 = scmp.eq.s32.totalorder %s24, 0
      %p45 = por %p43, %p44
      %p46 = scmp.ne.s32.totalorder %s32, %s33
      %p47 = scmp.eq.s32.totalorder %s25, 1
      %p48 = por %p46, %p47
      %p50 = scmp.ne.s32.totalorder %s33, %s49
      %p51 = scmp.eq.s32.totalorder %s25, 0
      %p52 = por %p50, %p51
      %s54 = sadd.s32 %s53, 1
      %p57 = scmp.eq.s32.totalorder %s19, 1
      %p58 = scmp.ne.s32.totalorder %s53, %s55
      %p59 = scmp.eq.s32.totalorder %s19, 0
      %p60 = por %p58, %p59
      %p61 = scmp.ne.s32.totalorder %s53, %s55
      %p62 = scmp.eq.s32.totalorder %s24, 1
      %p63 = por %p61, %p62
      %p64 = scmp.ne.s32.totalorder %s55, %s56
      %p65 = scmp.eq.s32.totalorder %s24, 0
      %p66 = por %p64, %p65
      %p67 = scmp.ne.s32.totalorder %s55, %s56
      %p68 = scmp.eq.s32.totalorder %s25, 1
      %p69 = por %p67, %p68
      %p71 = scmp.ne.s32.totalorder %s56, %s70
      %p72 = scmp.eq.s32.totalorder %s25, 0
      %p73 = por %p71, %p72
      %s75 = sadd.s32 %s74, 1
      %p78 = scmp.eq.s32.totalorder %s19, 1
      %p79 = scmp.ne.s32.totalorder %s74, %s76
      %p80 = scmp.eq.s32.totalorder %s19, 0
      %p81 = por %p79, %p80
      %p82 = scmp.ne.s32.totalorder %s74, %s76
      %p83 = scmp.eq.s32.totalorder %s24, 1
      %p84 = por %p82, %p83
      %p85 = scmp.ne.s32.totalorder %s76, %s77
      %p86 = scmp.eq.s32.totalorder %s24, 0
      %p87 = por %p85, %p86
      %p88 = scmp.ne.s32.totalorder %s76, %s77
      %p89 = scmp.eq.s32.totalorder %s25, 1
      %p90 = por %p88, %p89
      %p92 = scmp.ne.s32.totalorder %s77, %s91
      %p93 = scmp.eq.s32.totalorder %s25, 0
      %p94 = por %p92, %p93
      %s95 = ssub.s32 %s19, %s26
      %p96 = scmp.eq.s32.totalorder %s95, 0
      %s98 = sadd.s32 %s97, 1
      %s99 = scalar_select %p96, %s97, %s98
      %p102 = pneg %p96
      %p103 = scmp.eq.s32.totalorder %s19, 1
      %p104 = por %p102, %p103
      %p105 = scmp.ne.s32.totalorder %s97, %s100
      %p106 = scmp.eq.s32.totalorder %s19, 0
      %p107 = por %p105, %p106
      %p108 = scmp.ne.s32.totalorder %s97, %s100
      %p109 = scmp.eq.s32.totalorder %s24, 1
      %p110 = por %p108, %p109
      %p111 = scmp.ne.s32.totalorder %s100, %s101
      %p112 = scmp.eq.s32.totalorder %s24, 0
      %p113 = por %p111, %p112
      %p114 = scmp.ne.s32.totalorder %s100, %s101
      %p115 = scmp.eq.s32.totalorder %s25, 1
      %p116 = por %p114, %p115
      %p118 = scmp.ne.s32.totalorder %s101, %s117
      %p119 = scmp.eq.s32.totalorder %s25, 0
      %p120 = por %p118, %p119
      %s122 = sadd.s32 %s121, 1
      %p125 = scmp.eq.s32.totalorder %s19, 1
      %p126 = scmp.ne.s32.totalorder %s121, %s123
      %p127 = scmp.eq.s32.totalorder %s19, 0
      %p128 = por %p126, %p127
      %p129 = scmp.ne.s32.totalorder %s121, %s123
      %p130 = scmp.eq.s32.totalorder %s24, 1
      %p131 = por %p129, %p130
      %p132 = scmp.ne.s32.totalorder %s123, %s124
      %p133 = scmp.eq.s32.totalorder %s24, 0
      %p134 = por %p132, %p133
      %p135 = scmp.ne.s32.totalorder %s123, %s124
      %p136 = scmp.eq.s32.totalorder %s25, 1
      %p137 = por %p135, %p136
      %p139 = scmp.ne.s32.totalorder %s124, %s138
      %p140 = scmp.eq.s32.totalorder %s25, 0
      %p141 = por %p139, %p140
      %s143 = sadd.s32 %s142, 1
      %p146 = scmp.eq.s32.totalorder %s19, 1
      %p147 = scmp.ne.s32.totalorder %s142, %s144
      %p148 = scmp.eq.s32.totalorder %s19, 0
      %p149 = por %p147, %p148
      %p150 = scmp.ne.s32.totalorder %s142, %s144
      %p151 = scmp.eq.s32.totalorder %s24, 1
      %p152 = por %p150, %p151
      %p153 = scmp.ne.s32.totalorder %s144, %s145
      %p154 = scmp.eq.s32.totalorder %s24, 0
      %p155 = por %p153, %p154
      %p156 = scmp.ne.s32.totalorder %s144, %s145
      %p157 = scmp.eq.s32.totalorder %s25, 1
      %p158 = por %p156, %p157
      %p160 = scmp.ne.s32.totalorder %s145, %s159
      %p161 = scmp.eq.s32.totalorder %s25, 0
      %p162 = por %p160, %p161
      %s163 = ssub.s32 %s19, %s26
      %p164 = scmp.eq.s32.totalorder %s163, 0
      %s166 = sadd.s32 %s165, 1
      %s167 = scalar_select %p164, %s165, %s166
      %p170 = pneg %p164
      %p171 = scmp.eq.s32.totalorder %s19, 1
      %p172 = por %p170, %p171
      %p173 = scmp.ne.s32.totalorder %s165, %s168
      %p174 = scmp.eq.s32.totalorder %s19, 0
      %p175 = por %p173, %p174
      %p176 = scmp.ne.s32.totalorder %s165, %s168
      %p177 = scmp.eq.s32.totalorder %s24, 1
      %p178 = por %p176, %p177
      %p179 = scmp.ne.s32.totalorder %s168, %s169
      %p180 = scmp.eq.s32.totalorder %s24, 0
      %p181 = por %p179, %p180
      %p182 = scmp.ne.s32.totalorder %s168, %s169
      %p183 = scmp.eq.s32.totalorder %s25, 1
      %p184 = por %p182, %p183
      %p186 = scmp.ne.s32.totalorder %s169, %s185
      %p187 = scmp.eq.s32.totalorder %s25, 0
      %p188 = por %p186, %p187
      %p189 = scmp.le.s32.totalorder 1, %s19
      %p190 = scmp.lt.s32.totalorder %s19, 3
      %p191 = pnand %p189, %p190
      %p192 = pneg %p191
      // Predicated region
      $region9: #{tpu_custom_call.1} parent=5 // pred_check
        _
      $region10: #{tpu_custom_call.1} parent=5 // pred_check_branch
        %194 = sbr.rel (%p191) target = $region12
      $region11: #{tpu_custom_call.1} parent=5 // pred_region
        %s195 = ssub.s32 %s19, 1
        // Predicated region
        $region13: #{tpu_custom_call.1} parent=11 // pred_check
          %p196 = pneg %p66
        $region14: #{tpu_custom_call.1} parent=11 // pred_check_branch
          %198 = sbr.rel (%p196) target = $region16
        $region15: #{tpu_custom_call.1} parent=11 // pred_region
          %s200 = ssub.s32 24576, 24576
          %201 = vsyncadd [#allocation6], %s200
          %s202 = sshll.u32 [#allocation5], 4
          %s203 = int_to_ptr.vmem [resolvable:$true] %s202
          %208 = dma.hbm_to_vmem [thread:$0]  %s1, 24576, %s203, [#allocation6], 256, 256, 16
        $region16: #{tpu_custom_call.1} parent=11 // pred_fallthru
          _
        // Predicated region
        $region17: #{tpu_custom_call.1} parent=11 // pred_check
          %p209 = pneg %p87
        $region18: #{tpu_custom_call.1} parent=11 // pred_check_branch
          %211 = sbr.rel (%p209) target = $region20
        $region19: #{tpu_custom_call.1} parent=11 // pred_region
          _
        $region20: #{tpu_custom_call.1} parent=11 // pred_fallthru
          _
        // Predicated region
        $region21: #{tpu_custom_call.1} parent=11 // pred_check
          %p212 = pneg %p134
        $region22: #{tpu_custom_call.1} parent=11 // pred_check_branch
          %214 = sbr.rel (%p212) target = $region24
        $region23: #{tpu_custom_call.1} parent=11 // pred_region
          _
        $region24: #{tpu_custom_call.1} parent=11 // pred_fallthru
          _
        // Predicated region
        $region25: #{tpu_custom_call.1} parent=11 // pred_check
          %p215 = pneg %p155
        $region26: #{tpu_custom_call.1} parent=11 // pred_check_branch
          %217 = sbr.rel (%p215) target = $region28
        $region27: #{tpu_custom_call.1} parent=11 // pred_region
          _
        $region28: #{tpu_custom_call.1} parent=11 // pred_fallthru
          _
      $region12: #{tpu_custom_call.1} parent=5 // pred_fallthru
        _
      %p218 = scmp.lt.s32.totalorder %s19, 2
      // Predicated region
      $region29: #{tpu_custom_call.1} parent=5 // pred_check
        %p219 = pneg %p218
      $region30: #{tpu_custom_call.1} parent=5 // pred_check_branch
        %221 = sbr.rel (%p219) target = $region32
      $region31: #{tpu_custom_call.1} parent=5 // pred_region
        // Predicated region
        $region33: #{tpu_custom_call.1} parent=31 // pred_check
          %p222 = pneg %p39
        $region34: #{tpu_custom_call.1} parent=31 // pred_check_branch
          %224 = sbr.rel (%p222) target = $region36
        $region35: #{tpu_custom_call.1} parent=31 // pred_region
          %s225 = sand.u32 %s29, 1
          %s226 = scalar_lea.sflag [#allocation3], %s225
          %s227 = sand.u32 %s29, 1
          %s228 = smul.addr %s227, 48
          %s229 = scalar_lea.vmem [#allocation2], %s228
          %s231 = ssub.s32 768, 768
          %232 = vsyncadd %s226, %s231
          %s233 = smul.addr %s19, 6
          %s234 = smul.addr %s233, 128
          %s235 = scalar_lea.hbm %s0, %s234
          %s237 = sshll.u32 %s229, 4
          %s238 = int_to_ptr.vmem [resolvable:$true] %s237
          %240 = dma.hbm_to_vmem [thread:$0]  %s235, 768, %s238, %s226
        $region36: #{tpu_custom_call.1} parent=31 // pred_fallthru
          _
        // Predicated region
        $region37: #{tpu_custom_call.1} parent=31 // pred_check
          %p241 = pneg %p107
        $region38: #{tpu_custom_call.1} parent=31 // pred_check_branch
          %243 = sbr.rel (%p241) target = $region40
        $region39: #{tpu_custom_call.1} parent=31 // pred_region
          %p244 = scmp.lt.s32.totalorder %s19, 1
          %s245 = scalar_select %p244, %s19, 1
          %s246 = smul.addr %s245, 8
          %s247 = scalar_lea.vmem %s3, %s246
        $region40: #{tpu_custom_call.1} parent=31 // pred_fallthru
          _
      $region32: #{tpu_custom_call.1} parent=5 // pred_fallthru
        _
      %p248 = scmp.le.s32.totalorder 1, %s19
      %p249 = scmp.lt.s32.totalorder %s19, 3
      %p250 = pnand %p248, %p249
      %p251 = pneg %p250
      // Predicated region
      $region41: #{tpu_custom_call.1} parent=5 // pred_check
        _
      $region42: #{tpu_custom_call.1} parent=5 // pred_check_branch
        %253 = sbr.rel (%p250) target = $region44
      $region43: #{tpu_custom_call.1} parent=5 // pred_region
        %s254 = ssub.s32 %s19, 1
        %s255 = sand.u32 %s32, 1
        %s256 = scalar_lea.sflag [#allocation3], %s255
        %s257 = sand.u32 %s32, 1
        %s258 = smul.addr %s257, 48
        %s259 = scalar_lea.vmem [#allocation2], %s258
        // Predicated region
        $region45: #{tpu_custom_call.1} parent=43 // pred_check
          %p260 = pneg %p45
        $region46: #{tpu_custom_call.1} parent=43 // pred_check_branch
          %262 = sbr.rel (%p260) target = $region48
        $region47: #{tpu_custom_call.1} parent=43 // pred_region
          %263 = dma.done %s256, 768
        $region48: #{tpu_custom_call.1} parent=43 // pred_fallthru
          _
        // Predicated region
        $region49: #{tpu_custom_call.1} parent=43 // pred_check
          %p264 = pneg %p66
        $region50: #{tpu_custom_call.1} parent=43 // pred_check_branch
          %266 = sbr.rel (%p264) target = $region52
        $region51: #{tpu_custom_call.1} parent=43 // pred_region
          %267 = dma.done [#allocation6], 24576
        $region52: #{tpu_custom_call.1} parent=43 // pred_fallthru
          _
        %s268 = sand.u32 %s32, 1
        %s269 = scalar_lea.sflag [#allocation3], %s268
        %s270 = sand.u32 %s32, 1
        %s271 = smul.addr %s270, 48
        %s272 = scalar_lea.vmem [#allocation2], %s271
        %p273 = pneg %p45
        %p274 = pneg %p42
        %p275 = pneg %p66
        %p276 = pneg %p63
        %p277 = pneg %p87
        %p278 = pneg %p84
        %p279 = scmp.lt.s32.totalorder %s24, 1
        %s280 = scalar_select %p279, %s24, 1
        %s281 = smul.addr %s280, 8
        %s282 = scalar_lea.vmem %s3, %s281
        %p283 = pneg %p113
        %p284 = pneg %p110
        %p285 = pneg %p134
        %p286 = pneg %p131
        %p287 = pneg %p155
        %p288 = pneg %p152
        %p289 = pneg %p181
        %p290 = pneg %p178
        %s291 = sand.u32 %s168, 1
        %s292 = scalar_lea.sflag [#allocation4], %s291
        %s293 = sand.u32 %s168, 1
        %s294 = smul.addr %s293, 24
        %s295 = scalar_lea.vmem [#allocation7], %s294
        %p296 = scmp.lt.s32.totalorder %s24, 1
        %s297 = scalar_select %p296, %s24, 1
        %s298 = smul.addr %s297, 8
        %s299 = scalar_lea.vmem %s3, %s298
        %v300 = vld [vmem:[%s259] sm:$0xff]
        %v301 = vld [vmem:[%s259 + $0x8] sm:$0xff]
        %v302 = vld [vmem:[%s259 + $0x10] sm:$0xff]
        %v303 = vld [vmem:[%s259 + $0x18] sm:$0xff]
        %v304 = vld [vmem:[%s259 + $0x20] sm:$0xff]
        %v305 = vld [vmem:[%s259 + $0x28] sm:$0xff]
        %v306 = vpack.c.bf16 %v300, %v300
        %v307 = vpack.c.bf16 %v301, %v301
        %v308 = vpack.c.bf16 %v302, %v302
        %v309 = vpack.c.bf16 %v303, %v303
        %v310 = vpack.c.bf16 %v304, %v304
        %v311 = vpack.c.bf16 %v305, %v305
        %v312 = vld [vmem:[#allocation5] sm:$0xff]
        %v313 = vld [vmem:[#allocation5 + $0x8] sm:$0xff]
        %v314 = vld [vmem:[#allocation5 + $0x10] sm:$0xff]
        %v315 = vld [vmem:[#allocation5 + $0x18] sm:$0xff]
        %v316 = vld [vmem:[#allocation5 + $0x20] sm:$0xff]
        %v317 = vld [vmem:[#allocation5 + $0x28] sm:$0xff]
        %v318 = vld [vmem:[#allocation5 + $0x30] sm:$0xff]
        %v319 = vld [vmem:[#allocation5 + $0x38] sm:$0xff]
        %v320 = vld [vmem:[#allocation5 + $0x40] sm:$0xff]
        %v321 = vld [vmem:[#allocation5 + $0x48] sm:$0xff]
        %v322 = vld [vmem:[#allocation5 + $0x50] sm:$0xff]
        %v323 = vld [vmem:[#allocation5 + $0x58] sm:$0xff]
        %v324 = vld [vmem:[#allocation5 + $0x60] sm:$0xff]
        %v325 = vld [vmem:[#allocation5 + $0x68] sm:$0xff]
        %v326 = vld [vmem:[#allocation5 + $0x70] sm:$0xff]
        %v327 = vld [vmem:[#allocation5 + $0x78] sm:$0xff]
        %v328 = vld [vmem:[#allocation5 + $0x80] sm:$0xff]
        %v329 = vld [vmem:[#allocation5 + $0x88] sm:$0xff]
        %v330 = vld [vmem:[#allocation5 + $0x90] sm:$0xff]
        %v331 = vld [vmem:[#allocation5 + $0x98] sm:$0xff]
        %v332 = vld [vmem:[#allocation5 + $0xa0] sm:$0xff]
        %v333 = vld [vmem:[#allocation5 + $0xa8] sm:$0xff]
        %v334 = vld [vmem:[#allocation5 + $0xb0] sm:$0xff]
        %v335 = vld [vmem:[#allocation5 + $0xb8] sm:$0xff]
        %v336 = vld [vmem:[#allocation5 + $0xc0] sm:$0xff]
        %v337 = vld [vmem:[#allocation5 + $0xc8] sm:$0xff]
        %v338 = vld [vmem:[#allocation5 + $0xd0] sm:$0xff]
        %v339 = vld [vmem:[#allocation5 + $0xd8] sm:$0xff]
        %v340 = vld [vmem:[#allocation5 + $0xe0] sm:$0xff]
        %v341 = vld [vmem:[#allocation5 + $0xe8] sm:$0xff]
        %v342 = vld [vmem:[#allocation5 + $0xf0] sm:$0xff]
        %v343 = vld [vmem:[#allocation5 + $0xf8] sm:$0xff]
        %v344 = vld [vmem:[#allocation5 + $0x100] sm:$0xff]
        %v345 = vld [vmem:[#allocation5 + $0x108] sm:$0xff]
        %v346 = vld [vmem:[#allocation5 + $0x110] sm:$0xff]
        %v347 = vld [vmem:[#allocation5 + $0x118] sm:$0xff]
        %v348 = vld [vmem:[#allocation5 + $0x120] sm:$0xff]
        %v349 = vld [vmem:[#allocation5 + $0x128] sm:$0xff]
        %v350 = vld [vmem:[#allocation5 + $0x130] sm:$0xff]
        %v351 = vld [vmem:[#allocation5 + $0x138] sm:$0xff]
        %v352 = vld [vmem:[#allocation5 + $0x140] sm:$0xff]
        %v353 = vld [vmem:[#allocation5 + $0x148] sm:$0xff]
        %v354 = vld [vmem:[#allocation5 + $0x150] sm:$0xff]
        %v355 = vld [vmem:[#allocation5 + $0x158] sm:$0xff]
        %v356 = vld [vmem:[#allocation5 + $0x160] sm:$0xff]
        %v357 = vld [vmem:[#allocation5 + $0x168] sm:$0xff]
        %v358 = vld [vmem:[#allocation5 + $0x170] sm:$0xff]
        %v359 = vld [vmem:[#allocation5 + $0x178] sm:$0xff]
        %v360 = vld [vmem:[#allocation5 + $0x180] sm:$0xff]
        %v361 = vld [vmem:[#allocation5 + $0x188] sm:$0xff]
        %v362 = vld [vmem:[#allocation5 + $0x190] sm:$0xff]
        %v363 = vld [vmem:[#allocation5 + $0x198] sm:$0xff]
        %v364 = vld [vmem:[#allocation5 + $0x1a0] sm:$0xff]
        %v365 = vld [vmem:[#allocation5 + $0x1a8] sm:$0xff]
        %v366 = vld [vmem:[#allocation5 + $0x1b0] sm:$0xff]
        %v367 = vld [vmem:[#allocation5 + $0x1b8] sm:$0xff]
        %v368 = vld [vmem:[#allocation5 + $0x1c0] sm:$0xff]
        %v369 = vld [vmem:[#allocation5 + $0x1c8] sm:$0xff]
        %v370 = vld [vmem:[#allocation5 + $0x1d0] sm:$0xff]
        %v371 = vld [vmem:[#allocation5 + $0x1d8] sm:$0xff]
        %v372 = vld [vmem:[#allocation5 + $0x1e0] sm:$0xff]
        %v373 = vld [vmem:[#allocation5 + $0x1e8] sm:$0xff]
        %v374 = vld [vmem:[#allocation5 + $0x1f0] sm:$0xff]
        %v375 = vld [vmem:[#allocation5 + $0x1f8] sm:$0xff]
        %v376 = vld [vmem:[#allocation5 + $0x200] sm:$0xff]
        %v377 = vld [vmem:[#allocation5 + $0x208] sm:$0xff]
        %v378 = vld [vmem:[#allocation5 + $0x210] sm:$0xff]
        %v379 = vld [vmem:[#allocation5 + $0x218] sm:$0xff]
        %v380 = vld [vmem:[#allocation5 + $0x220] sm:$0xff]
        %v381 = vld [vmem:[#allocation5 + $0x228] sm:$0xff]
        %v382 = vld [vmem:[#allocation5 + $0x230] sm:$0xff]
        %v383 = vld [vmem:[#allocation5 + $0x238] sm:$0xff]
        %v384 = vld [vmem:[#allocation5 + $0x240] sm:$0xff]
        %v385 = vld [vmem:[#allocation5 + $0x248] sm:$0xff]
        %v386 = vld [vmem:[#allocation5 + $0x250] sm:$0xff]
        %v387 = vld [vmem:[#allocation5 + $0x258] sm:$0xff]
        %v388 = vld [vmem:[#allocation5 + $0x260] sm:$0xff]
        %v389 = vld [vmem:[#allocation5 + $0x268] sm:$0xff]
        %v390 = vld [vmem:[#allocation5 + $0x270] sm:$0xff]
        %v391 = vld [vmem:[#allocation5 + $0x278] sm:$0xff]
        %v392 = vld [vmem:[#allocation5 + $0x280] sm:$0xff]
        %v393 = vld [vmem:[#allocation5 + $0x288] sm:$0xff]
        %v394 = vld [vmem:[#allocation5 + $0x290] sm:$0xff]
        %v395 = vld [vmem:[#allocation5 + $0x298] sm:$0xff]
        %v396 = vld [vmem:[#allocation5 + $0x2a0] sm:$0xff]
        %v397 = vld [vmem:[#allocation5 + $0x2a8] sm:$0xff]
        %v398 = vld [vmem:[#allocation5 + $0x2b0] sm:$0xff]
        %v399 = vld [vmem:[#allocation5 + $0x2b8] sm:$0xff]
        %v400 = vld [vmem:[#allocation5 + $0x2c0] sm:$0xff]
        %v401 = vld [vmem:[#allocation5 + $0x2c8] sm:$0xff]
        %v402 = vld [vmem:[#allocation5 + $0x2d0] sm:$0xff]
        %v403 = vld [vmem:[#allocation5 + $0x2d8] sm:$0xff]
        %v404 = vld [vmem:[#allocation5 + $0x2e0] sm:$0xff]
        %v405 = vld [vmem:[#allocation5 + $0x2e8] sm:$0xff]
        %v406 = vld [vmem:[#allocation5 + $0x2f0] sm:$0xff]
        %v407 = vld [vmem:[#allocation5 + $0x2f8] sm:$0xff]
        %v408 = vld [vmem:[#allocation5 + $0x300] sm:$0xff]
        %v409 = vld [vmem:[#allocation5 + $0x308] sm:$0xff]
        %v410 = vld [vmem:[#allocation5 + $0x310] sm:$0xff]
        %v411 = vld [vmem:[#allocation5 + $0x318] sm:$0xff]
        %v412 = vld [vmem:[#allocation5 + $0x320] sm:$0xff]
        %v413 = vld [vmem:[#allocation5 + $0x328] sm:$0xff]
        %v414 = vld [vmem:[#allocation5 + $0x330] sm:$0xff]
        %v415 = vld [vmem:[#allocation5 + $0x338] sm:$0xff]
        %v416 = vld [vmem:[#allocation5 + $0x340] sm:$0xff]
        %v417 = vld [vmem:[#allocation5 + $0x348] sm:$0xff]
        %v418 = vld [vmem:[#allocation5 + $0x350] sm:$0xff]
        %v419 = vld [vmem:[#allocation5 + $0x358] sm:$0xff]
        %v420 = vld [vmem:[#allocation5 + $0x360] sm:$0xff]
        %v421 = vld [vmem:[#allocation5 + $0x368] sm:$0xff]
        %v422 = vld [vmem:[#allocation5 + $0x370] sm:$0xff]
        %v423 = vld [vmem:[#allocation5 + $0x378] sm:$0xff]
        %v424 = vld [vmem:[#allocation5 + $0x380] sm:$0xff]
        %v425 = vld [vmem:[#allocation5 + $0x388] sm:$0xff]
        %v426 = vld [vmem:[#allocation5 + $0x390] sm:$0xff]
        %v427 = vld [vmem:[#allocation5 + $0x398] sm:$0xff]
        %v428 = vld [vmem:[#allocation5 + $0x3a0] sm:$0xff]
        %v429 = vld [vmem:[#allocation5 + $0x3a8] sm:$0xff]
        %v430 = vld [vmem:[#allocation5 + $0x3b0] sm:$0xff]
        %v431 = vld [vmem:[#allocation5 + $0x3b8] sm:$0xff]
        %v432 = vld [vmem:[#allocation5 + $0x3c0] sm:$0xff]
        %v433 = vld [vmem:[#allocation5 + $0x3c8] sm:$0xff]
        %v434 = vld [vmem:[#allocation5 + $0x3d0] sm:$0xff]
        %v435 = vld [vmem:[#allocation5 + $0x3d8] sm:$0xff]
        %v436 = vld [vmem:[#allocation5 + $0x3e0] sm:$0xff]
        %v437 = vld [vmem:[#allocation5 + $0x3e8] sm:$0xff]
        %v438 = vld [vmem:[#allocation5 + $0x3f0] sm:$0xff]
        %v439 = vld [vmem:[#allocation5 + $0x3f8] sm:$0xff]
        %v440 = vld [vmem:[#allocation5 + $0x400] sm:$0xff]
        %v441 = vld [vmem:[#allocation5 + $0x408] sm:$0xff]
        %v442 = vld [vmem:[#allocation5 + $0x410] sm:$0xff]
        %v443 = vld [vmem:[#allocation5 + $0x418] sm:$0xff]
        %v444 = vld [vmem:[#allocation5 + $0x420] sm:$0xff]
        %v445 = vld [vmem:[#allocation5 + $0x428] sm:$0xff]
        %v446 = vld [vmem:[#allocation5 + $0x430] sm:$0xff]
        %v447 = vld [vmem:[#allocation5 + $0x438] sm:$0xff]
        %v448 = vld [vmem:[#allocation5 + $0x440] sm:$0xff]
        %v449 = vld [vmem:[#allocation5 + $0x448] sm:$0xff]
        %v450 = vld [vmem:[#allocation5 + $0x450] sm:$0xff]
        %v451 = vld [vmem:[#allocation5 + $0x458] sm:$0xff]
        %v452 = vld [vmem:[#allocation5 + $0x460] sm:$0xff]
        %v453 = vld [vmem:[#allocation5 + $0x468] sm:$0xff]
        %v454 = vld [vmem:[#allocation5 + $0x470] sm:$0xff]
        %v455 = vld [vmem:[#allocation5 + $0x478] sm:$0xff]
        %v456 = vld [vmem:[#allocation5 + $0x480] sm:$0xff]
        %v457 = vld [vmem:[#allocation5 + $0x488] sm:$0xff]
        %v458 = vld [vmem:[#allocation5 + $0x490] sm:$0xff]
        %v459 = vld [vmem:[#allocation5 + $0x498] sm:$0xff]
        %v460 = vld [vmem:[#allocation5 + $0x4a0] sm:$0xff]
        %v461 = vld [vmem:[#allocation5 + $0x4a8] sm:$0xff]
        %v462 = vld [vmem:[#allocation5 + $0x4b0] sm:$0xff]
        %v463 = vld [vmem:[#allocation5 + $0x4b8] sm:$0xff]
        %v464 = vld [vmem:[#allocation5 + $0x4c0] sm:$0xff]
        %v465 = vld [vmem:[#allocation5 + $0x4c8] sm:$0xff]
        %v466 = vld [vmem:[#allocation5 + $0x4d0] sm:$0xff]
        %v467 = vld [vmem:[#allocation5 + $0x4d8] sm:$0xff]
        %v468 = vld [vmem:[#allocation5 + $0x4e0] sm:$0xff]
        %v469 = vld [vmem:[#allocation5 + $0x4e8] sm:$0xff]
        %v470 = vld [vmem:[#allocation5 + $0x4f0] sm:$0xff]
        %v471 = vld [vmem:[#allocation5 + $0x4f8] sm:$0xff]
        %v472 = vld [vmem:[#allocation5 + $0x500] sm:$0xff]
        %v473 = vld [vmem:[#allocation5 + $0x508] sm:$0xff]
        %v474 = vld [vmem:[#allocation5 + $0x510] sm:$0xff]
        %v475 = vld [vmem:[#allocation5 + $0x518] sm:$0xff]
        %v476 = vld [vmem:[#allocation5 + $0x520] sm:$0xff]
        %v477 = vld [vmem:[#allocation5 + $0x528] sm:$0xff]
        %v478 = vld [vmem:[#allocation5 + $0x530] sm:$0xff]
        %v479 = vld [vmem:[#allocation5 + $0x538] sm:$0xff]
        %v480 = vld [vmem:[#allocation5 + $0x540] sm:$0xff]
        %v481 = vld [vmem:[#allocation5 + $0x548] sm:$0xff]
        %v482 = vld [vmem:[#allocation5 + $0x550] sm:$0xff]
        %v483 = vld [vmem:[#allocation5 + $0x558] sm:$0xff]
        %v484 = vld [vmem:[#allocation5 + $0x560] sm:$0xff]
        %v485 = vld [vmem:[#allocation5 + $0x568] sm:$0xff]
        %v486 = vld [vmem:[#allocation5 + $0x570] sm:$0xff]
        %v487 = vld [vmem:[#allocation5 + $0x578] sm:$0xff]
        %v488 = vld [vmem:[#allocation5 + $0x580] sm:$0xff]
        %v489 = vld [vmem:[#allocation5 + $0x588] sm:$0xff]
        %v490 = vld [vmem:[#allocation5 + $0x590] sm:$0xff]
        %v491 = vld [vmem:[#allocation5 + $0x598] sm:$0xff]
        %v492 = vld [vmem:[#allocation5 + $0x5a0] sm:$0xff]
        %v493 = vld [vmem:[#allocation5 + $0x5a8] sm:$0xff]
        %v494 = vld [vmem:[#allocation5 + $0x5b0] sm:$0xff]
        %v495 = vld [vmem:[#allocation5 + $0x5b8] sm:$0xff]
        %v496 = vld [vmem:[#allocation5 + $0x5c0] sm:$0xff]
        %v497 = vld [vmem:[#allocation5 + $0x5c8] sm:$0xff]
        %v498 = vld [vmem:[#allocation5 + $0x5d0] sm:$0xff]
        %v499 = vld [vmem:[#allocation5 + $0x5d8] sm:$0xff]
        %v500 = vld [vmem:[#allocation5 + $0x5e0] sm:$0xff]
        %v501 = vld [vmem:[#allocation5 + $0x5e8] sm:$0xff]
        %v502 = vld [vmem:[#allocation5 + $0x5f0] sm:$0xff]
        %v503 = vld [vmem:[#allocation5 + $0x5f8] sm:$0xff]
        %v504 = vpack.c.bf16 %v314, %v312
        %v505 = vpack.c.bf16 %v315, %v313
        %v506 = vpack.c.bf16 %v318, %v316
        %v507 = vpack.c.bf16 %v319, %v317
        %v508 = vpack.c.bf16 %v322, %v320
        %v509 = vpack.c.bf16 %v323, %v321
        %v510 = vpack.c.bf16 %v326, %v324
        %v511 = vpack.c.bf16 %v327, %v325
        %v512 = vpack.c.bf16 %v330, %v328
        %v513 = vpack.c.bf16 %v331, %v329
        %v514 = vpack.c.bf16 %v334, %v332
        %v515 = vpack.c.bf16 %v335, %v333
        %v516 = vpack.c.bf16 %v338, %v336
        %v517 = vpack.c.bf16 %v339, %v337
        %v518 = vpack.c.bf16 %v342, %v340
        %v519 = vpack.c.bf16 %v343, %v341
        %v520 = vpack.c.bf16 %v346, %v344
        %v521 = vpack.c.bf16 %v347, %v345
        %v522 = vpack.c.bf16 %v350, %v348
        %v523 = vpack.c.bf16 %v351, %v349
        %v524 = vpack.c.bf16 %v354, %v352
        %v525 = vpack.c.bf16 %v355, %v353
        %v526 = vpack.c.bf16 %v358, %v356
        %v527 = vpack.c.bf16 %v359, %v357
        %v528 = vpack.c.bf16 %v362, %v360
        %v529 = vpack.c.bf16 %v363, %v361
        %v530 = vpack.c.bf16 %v366, %v364
        %v531 = vpack.c.bf16 %v367, %v365
        %v532 = vpack.c.bf16 %v370, %v368
        %v533 = vpack.c.bf16 %v371, %v369
        %v534 = vpack.c.bf16 %v374, %v372
        %v535 = vpack.c.bf16 %v375, %v373
        %v536 = vpack.c.bf16 %v378, %v376
        %v537 = vpack.c.bf16 %v379, %v377
        %v538 = vpack.c.bf16 %v382, %v380
        %v539 = vpack.c.bf16 %v383, %v381
        %v540 = vpack.c.bf16 %v386, %v384
        %v541 = vpack.c.bf16 %v387, %v385
        %v542 = vpack.c.bf16 %v390, %v388
        %v543 = vpack.c.bf16 %v391, %v389
        %v544 = vpack.c.bf16 %v394, %v392
        %v545 = vpack.c.bf16 %v395, %v393
        %v546 = vpack.c.bf16 %v398, %v396
        %v547 = vpack.c.bf16 %v399, %v397
        %v548 = vpack.c.bf16 %v402, %v400
        %v549 = vpack.c.bf16 %v403, %v401
        %v550 = vpack.c.bf16 %v406, %v404
        %v551 = vpack.c.bf16 %v407, %v405
        %v552 = vpack.c.bf16 %v410, %v408
        %v553 = vpack.c.bf16 %v411, %v409
        %v554 = vpack.c.bf16 %v414, %v412
        %v555 = vpack.c.bf16 %v415, %v413
        %v556 = vpack.c.bf16 %v418, %v416
        %v557 = vpack.c.bf16 %v419, %v417
        %v558 = vpack.c.bf16 %v422, %v420
        %v559 = vpack.c.bf16 %v423, %v421
        %v560 = vpack.c.bf16 %v426, %v424
        %v561 = vpack.c.bf16 %v427, %v425
        %v562 = vpack.c.bf16 %v430, %v428
        %v563 = vpack.c.bf16 %v431, %v429
        %v564 = vpack.c.bf16 %v434, %v432
        %v565 = vpack.c.bf16 %v435, %v433
        %v566 = vpack.c.bf16 %v438, %v436
        %v567 = vpack.c.bf16 %v439, %v437
        %v568 = vpack.c.bf16 %v442, %v440
        %v569 = vpack.c.bf16 %v443, %v441
        %v570 = vpack.c.bf16 %v446, %v444
        %v571 = vpack.c.bf16 %v447, %v445
        %v572 = vpack.c.bf16 %v450, %v448
        %v573 = vpack.c.bf16 %v451, %v449
        %v574 = vpack.c.bf16 %v454, %v452
        %v575 = vpack.c.bf16 %v455, %v453
        %v576 = vpack.c.bf16 %v458, %v456
        %v577 = vpack.c.bf16 %v459, %v457
        %v578 = vpack.c.bf16 %v462, %v460
        %v579 = vpack.c.bf16 %v463, %v461
        %v580 = vpack.c.bf16 %v466, %v464
        %v581 = vpack.c.bf16 %v467, %v465
        %v582 = vpack.c.bf16 %v470, %v468
        %v583 = vpack.c.bf16 %v471, %v469
        %v584 = vpack.c.bf16 %v474, %v472
        %v585 = vpack.c.bf16 %v475, %v473
        %v586 = vpack.c.bf16 %v478, %v476
        %v587 = vpack.c.bf16 %v479, %v477
        %v588 = vpack.c.bf16 %v482, %v480
        %v589 = vpack.c.bf16 %v483, %v481
        %v590 = vpack.c.bf16 %v486, %v484
        %v591 = vpack.c.bf16 %v487, %v485
        %v592 = vpack.c.bf16 %v490, %v488
        %v593 = vpack.c.bf16 %v491, %v489
        %v594 = vpack.c.bf16 %v494, %v492
        %v595 = vpack.c.bf16 %v495, %v493
        %v596 = vpack.c.bf16 %v498, %v496
        %v597 = vpack.c.bf16 %v499, %v497
        %v598 = vpack.c.bf16 %v502, %v500
        %v599 = vpack.c.bf16 %v503, %v501
        %v600 = vld [vmem:[%s2] sm:$0x3]
        %v602 = vlaneseq
        %v603 = vshrl.u32 %v602, 7
        %v604 = vsub.s32 0, %v603
        %v605 = vrot.slane %v600, %v604
        %v606 = vlaneseq
        %v607 = vshrl.u32 %v606, 7
        %v608 = vsub.s32 1, %v607
        %v609 = vrot.slane %v600, %v608
        %612 = vmatprep.subr.bf16.mxu0 %v505
        %613 = vmatpush1.bf16.msra.mxu0 %v504
        %614 = vmatprep.subr.bf16.mxu0 %v507
        %615 = vmatpush1.bf16.msra.mxu0 %v506
        %616 = vmatprep.subr.bf16.mxu0 %v509
        %617 = vmatpush1.bf16.msra.mxu0 %v508
        %618 = vmatprep.subr.bf16.mxu0 %v511
        %619 = vmatpush1.bf16.msra.mxu0 %v510
        %620 = vmatprep.subr.bf16.mxu0 %v513
        %621 = vmatpush1.bf16.msra.mxu0 %v512
        %622 = vmatprep.subr.bf16.mxu0 %v515
        %623 = vmatpush1.bf16.msra.mxu0 %v514
        %624 = vmatprep.subr.bf16.mxu0 %v517
        %625 = vmatpush1.bf16.msra.mxu0 %v516
        %626 = vmatprep.subr.bf16.mxu0 %v519
        %627 = vmatpush1.bf16.msra.mxu0 %v518
        %628 = vmatprep.subr.bf16.mxu0 %v521
        %629 = vmatpush1.bf16.msra.mxu0 %v520
        %630 = vmatprep.subr.bf16.mxu0 %v523
        %631 = vmatpush1.bf16.msra.mxu0 %v522
        %632 = vmatprep.subr.bf16.mxu0 %v525
        %633 = vmatpush1.bf16.msra.mxu0 %v524
        %634 = vmatprep.subr.bf16.mxu0 %v527
        %635 = vmatpush1.bf16.msra.mxu0 %v526
        %636 = vmatprep.subr.bf16.mxu0 %v529
        %637 = vmatpush1.bf16.msra.mxu0 %v528
        %638 = vmatprep.subr.bf16.mxu0 %v531
        %639 = vmatpush1.bf16.msra.mxu0 %v530
        %640 = vmatprep.subr.bf16.mxu0 %v533
        %641 = vmatpush1.bf16.msra.mxu0 %v532
        %642 = vmatprep.subr.bf16.mxu0 %v535
        %643 = vmatpush1.bf16.msra.mxu0 %v534
        %644 = vmatprep.mubr.bf16.mxu0 %v307
        %645 = vmatmul.mubr.bf16.gmra.mrb[0].mxu0 %v306
        %v646 = vpop.f32.mrb[0].mxu0
        %v647 = vadd.f32 %v605, %v646
        %v648 = vpop.f32.mrb[0].mxu0
        %v649 = vadd.f32 %v609, %v648
        %v650 = vpop.f32.mrb[0].mxu0
        %v651 = vpop.f32.mrb[0].mxu0
        %652 = vdwg.mxu0
        %653 = vmatprep.subr.bf16.mxu0 %v537
        %654 = vmatpush1.bf16.msra.mxu0 %v536
        %655 = vmatprep.subr.bf16.mxu0 %v539
        %656 = vmatpush1.bf16.msra.mxu0 %v538
        %657 = vmatprep.subr.bf16.mxu0 %v541
        %658 = vmatpush1.bf16.msra.mxu0 %v540
        %659 = vmatprep.subr.bf16.mxu0 %v543
        %660 = vmatpush1.bf16.msra.mxu0 %v542
        %661 = vmatprep.subr.bf16.mxu0 %v545
        %662 = vmatpush1.bf16.msra.mxu0 %v544
        %663 = vmatprep.subr.bf16.mxu0 %v547
        %664 = vmatpush1.bf16.msra.mxu0 %v546
        %665 = vmatprep.subr.bf16.mxu0 %v549
        %666 = vmatpush1.bf16.msra.mxu0 %v548
        %667 = vmatprep.subr.bf16.mxu0 %v551
        %668 = vmatpush1.bf16.msra.mxu0 %v550
        %669 = vmatprep.subr.bf16.mxu0 %v553
        %670 = vmatpush1.bf16.msra.mxu0 %v552
        %671 = vmatprep.subr.bf16.mxu0 %v555
        %672 = vmatpush1.bf16.msra.mxu0 %v554
        %673 = vmatprep.subr.bf16.mxu0 %v557
        %674 = vmatpush1.bf16.msra.mxu0 %v556
        %675 = vmatprep.subr.bf16.mxu0 %v559
        %676 = vmatpush1.bf16.msra.mxu0 %v558
        %677 = vmatprep.subr.bf16.mxu0 %v561
        %678 = vmatpush1.bf16.msra.mxu0 %v560
        %679 = vmatprep.subr.bf16.mxu0 %v563
        %680 = vmatpush1.bf16.msra.mxu0 %v562
        %681 = vmatprep.subr.bf16.mxu0 %v565
        %682 = vmatpush1.bf16.msra.mxu0 %v564
        %683 = vmatprep.subr.bf16.mxu0 %v567
        %684 = vmatpush1.bf16.msra.mxu0 %v566
        %685 = vmatprep.mubr.bf16.mxu0 %v309
        %686 = vmatmul.mubr.bf16.gmra.mrb[0].mxu0 %v308
        %v687 = vpop.f32.mrb[0].mxu0
        %v688 = vadd.f32 %v647, %v687
        %v689 = vpop.f32.mrb[0].mxu0
        %v690 = vadd.f32 %v649, %v689
        %v691 = vpop.f32.mrb[0].mxu0
        %v692 = vpop.f32.mrb[0].mxu0
        %693 = vdwg.mxu0
        %694 = vmatprep.subr.bf16.mxu0 %v569
        %695 = vmatpush1.bf16.msra.mxu0 %v568
        %696 = vmatprep.subr.bf16.mxu0 %v571
        %697 = vmatpush1.bf16.msra.mxu0 %v570
        %698 = vmatprep.subr.bf16.mxu0 %v573
        %699 = vmatpush1.bf16.msra.mxu0 %v572
        %700 = vmatprep.subr.bf16.mxu0 %v575
        %701 = vmatpush1.bf16.msra.mxu0 %v574
        %702 = vmatprep.subr.bf16.mxu0 %v577
        %703 = vmatpush1.bf16.msra.mxu0 %v576
        %704 = vmatprep.subr.bf16.mxu0 %v579
        %705 = vmatpush1.bf16.msra.mxu0 %v578
        %706 = vmatprep.subr.bf16.mxu0 %v581
        %707 = vmatpush1.bf16.msra.mxu0 %v580
        %708 = vmatprep.subr.bf16.mxu0 %v583
        %709 = vmatpush1.bf16.msra.mxu0 %v582
        %710 = vmatprep.subr.bf16.mxu0 %v585
        %711 = vmatpush1.bf16.msra.mxu0 %v584
        %712 = vmatprep.subr.bf16.mxu0 %v587
        %713 = vmatpush1.bf16.msra.mxu0 %v586
        %714 = vmatprep.subr.bf16.mxu0 %v589
        %715 = vmatpush1.bf16.msra.mxu0 %v588
        %716 = vmatprep.subr.bf16.mxu0 %v591
        %717 = vmatpush1.bf16.msra.mxu0 %v590
        %718 = vmatprep.subr.bf16.mxu0 %v593
        %719 = vmatpush1.bf16.msra.mxu0 %v592
        %720 = vmatprep.subr.bf16.mxu0 %v595
        %721 = vmatpush1.bf16.msra.mxu0 %v594
        %722 = vmatprep.subr.bf16.mxu0 %v597
        %723 = vmatpush1.bf16.msra.mxu0 %v596
        %724 = vmatprep.subr.bf16.mxu0 %v599
        %725 = vmatpush1.bf16.msra.mxu0 %v598
        %726 = vmatprep.mubr.bf16.mxu0 %v311
        %727 = vmatmul.mubr.bf16.gmra.mrb[0].mxu0 %v310
        %v728 = vpop.f32.mrb[0].mxu0
        %v729 = vadd.f32 %v688, %v728
        %v730 = vpop.f32.mrb[0].mxu0
        %v731 = vadd.f32 %v690, %v730
        %v732 = vpop.f32.mrb[0].mxu0
        %v733 = vpop.f32.mrb[0].mxu0
        %734 = vdwg.mxu0
        %v735 = vld [vmem:[%s299] sm:$0xff]
        %v736 = vld [vmem:[%s4] sm:$0x7]
        %738 = vset.pattern.permute.xlu0 0
        %739 = vperm.xlu0 %738, %v735
        %v740 = vpop.permute.xlu0 %739
        %v742 = vlaneseq
        %v743 = vshrl.u32 %v742, 7
        %v744 = vsub.s32 0, %v743
        %v745 = vrot.slane %v736, %v744
        %v746 = vmul.f32 %v740, %v745
        %747 = vset.pattern.permute.xlu0 1
        %748 = vperm.xlu0 %747, %v735
        %v749 = vpop.permute.xlu0 %748
        %v751 = vlaneseq
        %v752 = vshrl.u32 %v751, 7
        %v753 = vsub.s32 1, %v752
        %v754 = vrot.slane %v736, %v753
        %v755 = vmul.f32 %v749, %v754
        %v756 = vadd.f32 %v746, %v755
        %757 = vset.pattern.permute.xlu0 2
        %758 = vperm.xlu0 %757, %v735
        %v759 = vpop.permute.xlu0 %758
        %v761 = vlaneseq
        %v762 = vshrl.u32 %v761, 7
        %v763 = vsub.s32 2, %v762
        %v764 = vrot.slane %v736, %v763
        %v765 = vmul.f32 %v759, %v764
        %v766 = vadd.f32 %v756, %v765
        %v767 = vld [vmem:[%s5] sm:$0x1]
        %v769 = vlaneseq
        %v770 = vshrl.u32 %v769, 7
        %v771 = vsub.s32 0, %v770
        %v772 = vrot.slane %v767, %v771
        %v774 = vadd.f32 %v766, %v772
        %775 = vst [vmem:[%s295] sm:$0xff] %v729
        %776 = vst [vmem:[%s295 + $0x8] sm:$0xff] %v731
        %777 = vst [vmem:[%s295 + $0x10] sm:$0xff] %v774
        %s778 = sand.u32 %s168, 1
        %s779 = scalar_lea.sflag [#allocation4], %s778
        %s780 = sand.u32 %s168, 1
        %s781 = smul.addr %s780, 24
        %s782 = scalar_lea.vmem [#allocation7], %s781
        // Predicated region
        $region53: #{tpu_custom_call.1} parent=43 // pred_check
          %p783 = pneg %p178
        $region54: #{tpu_custom_call.1} parent=43 // pred_check_branch
          %785 = sbr.rel (%p783) target = $region56
        $region55: #{tpu_custom_call.1} parent=43 // pred_region
          %s787 = ssub.s32 384, 384
          %788 = vsyncadd %s779, %s787
          %s789 = smul.addr %s24, 3
          %s790 = smul.addr %s789, 128
          %s791 = scalar_lea.hbm %s6, %s790
          %s793 = sshll.u32 %s782, 4
          %s794 = int_to_ptr.vmem [resolvable:$true] %s793
          %796 = dma.vmem_to_hbm [thread:$0]  %s794, 384, %s791, %s779
        $region56: #{tpu_custom_call.1} parent=43 // pred_fallthru
          _
      $region44: #{tpu_custom_call.1} parent=5 // pred_fallthru
        _
      %p797 = scmp.le.s32.totalorder 2, %s19
      // Predicated region
      $region57: #{tpu_custom_call.1} parent=5 // pred_check
        %p798 = pneg %p797
      $region58: #{tpu_custom_call.1} parent=5 // pred_check_branch
        %800 = sbr.rel (%p798) target = $region60
      $region59: #{tpu_custom_call.1} parent=5 // pred_region
        %s801 = ssub.s32 %s19, 2
        // Predicated region
        $region61: #{tpu_custom_call.1} parent=59 // pred_check
          %p802 = pneg %p184
        $region62: #{tpu_custom_call.1} parent=59 // pred_check_branch
          %804 = sbr.rel (%p802) target = $region64
        $region63: #{tpu_custom_call.1} parent=59 // pred_region
          %s805 = sand.u32 %s169, 1
          %s806 = scalar_lea.sflag [#allocation4], %s805
          %s807 = sand.u32 %s169, 1
          %s808 = smul.addr %s807, 24
          %s809 = scalar_lea.vmem [#allocation7], %s808
          %810 = dma.done %s806, 384
        $region64: #{tpu_custom_call.1} parent=59 // pred_fallthru
          _
      $region60: #{tpu_custom_call.1} parent=5 // pred_fallthru
        _
    $region6: #{tpu_custom_call.1} parent=1 // loop_footer
      %s23 = sadd.s32 1, %s19
    $region7: #{tpu_custom_call.1} parent=1 // loop_footer_branch
      %18 = sbr.rel target = $region3
    $region8: #{tpu_custom_call.1} parent=1 // loop_exit
      _
    %811 = vsyncpa [#allocation3], 1
    %s812 = scalar_lea.sflag [#allocation3], 1
    %813 = vsyncpa %s812, 1
    %814 = vsyncpa [#allocation6], 1
    %815 = vsyncpa [#allocation4], 1
    %s816 = scalar_lea.sflag [#allocation4], 1
    %817 = vsyncpa %s816, 1

</llo_original>
